<compile_context>
chip_gen: v7x
topology: tpu7x:2x2x1
jax: 0.10.0
libtpu: 0.0.40
codegen_flags: <defaults>
</compile_context>

<pallas_src>
import numpy as np
import jax
import jax.numpy as jnp
from jax.experimental import pallas as pl
from jax.experimental.pallas import tpu as pltpu


def _sigmoid(z):
    # same formulation inside the kernel and in the pure-JAX reference
    return 1.0 / (1.0 + jnp.exp(-z))


# ----------------------------------------------------------------------------- roll convention probe

_ROLL_LIKE_JNP = None


def _get_roll_convention():
    """pltpu.roll is expected to follow jnp.roll semantics (out[p] = in[p - shift]).
    Verify once on the real backend so the 3x3 tap shifts can never be silently
    reversed; the result is a static Python bool baked into the kernel build."""
    global _ROLL_LIKE_JNP
    if _ROLL_LIKE_JNP is None:
        def probe(x_ref, o_ref):
            o_ref[...] = pltpu.roll(x_ref[...], 1, 1)

        x = jnp.tile(jax.lax.iota(jnp.float32, 128)[None, :], (8, 1))
        y = pl.pallas_call(probe, out_shape=jax.ShapeDtypeStruct((8, 128), jnp.float32))(x)
        _ROLL_LIKE_JNP = bool(jnp.all(y == jnp.roll(x, 1, axis=1)))
    return _ROLL_LIKE_JNP


# ----------------------------------------------------------------------------- fused kernel

def _make_gfb_kernel(C, H, W, roll_like_jnp):
    HW = H * W

    def kernel(ir_ref, vis_ref, g_ref,
               masks_ref, bt_ref,
               wg_ref, sg_ref, bg_ref,
               w1_ref, w2_ref,
               w3_ref, s3_ref, b3_ref,
               msa_ref, bsa_ref,
               w4_ref, s4_ref, b4_ref,
               wo_ref, so_ref, bo_ref,
               o_ref):
        f32 = jnp.float32
        masks = masks_ref[...]                                    # (9, HW) tap-validity masks

        def tap(x_cm, t):
            # tap t of a stride-1/pad-1 3x3 conv, channel-major: out[:, p] = x[:, p + off]
            kh, kw = divmod(t, 3)
            off = (kh - 1) * W + (kw - 1)
            if off == 0:                                          # center tap: always valid
                return x_cm
            shift = (-off if roll_like_jnp else off) % HW
            shifted = pltpu.roll(x_cm, shift, 1)                  # XLU lane rotate, no pad/slice
            return shifted * masks[t:t + 1, :]                    # zero wrapped / out-of-image taps

        def conv3x3_bn_relu(x_cm, w_ref, s_col, b_col):
            """3x3 conv (stride 1, pad 1) + folded BN + ReLU, channel-major.
            Three accumulating K=3C MXU dots (one per kernel row); no big im2col buffer."""
            y = None
            for kh in range(3):
                row = jnp.concatenate([tap(x_cm, kh * 3 + kw) for kw in range(3)], axis=0)
                part = jnp.dot(w_ref[kh], row, preferred_element_type=f32)        # (C, HW)
                y = part if y is None else y + part
            return jnp.maximum(y * s_col + b_col, 0.0)

        # ---- global branch: bilinear resize as one Kronecker matmul, then 1x1 conv+BN+ReLU
        g_rs = jnp.dot(g_ref[0], bt_ref[...], preferred_element_type=f32)          # (Cg, HW)
        g3 = jnp.dot(wg_ref[...], g_rs, preferred_element_type=f32)                # (C, HW)
        g3 = jnp.maximum(g3 * sg_ref[...] + bg_ref[...], 0.0)

        # ---- ir branch: channel attention (fused max/avg SE pass) * ir, then 3x3 conv+BN+ReLU
        x_ir = ir_ref[0]                                                           # (C, HW)
        mx = jnp.max(x_ir, axis=1, keepdims=True)                                  # (C, 1)
        av = jnp.mean(x_ir, axis=1, keepdims=True)                                 # (C, 1)
        cols = jnp.concatenate([mx, av], axis=1)                                   # (C, 2)
        h = jnp.maximum(jnp.dot(w1_ref[...], cols, preferred_element_type=f32), 0.0)
        y2 = jnp.dot(w2_ref[...], h, preferred_element_type=f32)                   # (C, 2)
        ca = _sigmoid(y2[:, 0:1] + y2[:, 1:2])                                     # (C, 1)
        ir3 = conv3x3_bn_relu(x_ir * ca, w3_ref, s3_ref[...], b3_ref[...])

        # ---- vis branch: spatial attention as one (1,2HW)x(2HW,HW) matmul * vis, 3x3 conv+BN+ReLU
        x_vis = vis_ref[0]                                                         # (C, HW)
        smx = jnp.max(x_vis, axis=0, keepdims=True)                                # (1, HW)
        sav = jnp.mean(x_vis, axis=0, keepdims=True)                               # (1, HW)
        pooled = jnp.concatenate([smx, sav], axis=1)                               # (1, 2*HW)
        logits = jnp.dot(pooled, msa_ref[...], preferred_element_type=f32) + bsa_ref[...]
        sa = _sigmoid(logits)                                                      # (1, HW)
        vis4 = conv3x3_bn_relu(x_vis * sa, w4_ref, s4_ref[...], b4_ref[...])

        # ---- fuse: three accumulating 1x1 dots (no (3C,HW) concat) + BN + ReLU, lane-dense store
        out = (jnp.dot(wo_ref[0], ir3, preferred_element_type=f32)
               + jnp.dot(wo_ref[1], vis4, preferred_element_type=f32)
               + jnp.dot(wo_ref[2], g3, preferred_element_type=f32))               # (Co, HW)
        o_ref[0] = jnp.maximum(out * so_ref[...] + bo_ref[...], 0.0).astype(o_ref.dtype)

    return kernel


def gfb_forward(ir, vis, global_info, kp):
    """ir, vis: (N, C, H, W); global_info: (N, Cg, Hg, Wg) -> (N, Co, H, W), all NCHW."""
    N, C, H, W = ir.shape
    Cg, Hg, Wg = global_info.shape[1:]
    HW = H * W
    HgWg = Hg * Wg
    Co = kp['woT'].shape[1]

    # free, layout-preserving reshapes only (no transposes / pads in XLA)
    ir_cm = ir.reshape(N, C, HW)
    vis_cm = vis.reshape(N, C, HW)
    g_cm = global_info.reshape(N, Cg, HgWg)

    weights = [kp['masks'], kp['BT'],
               kp['wgT'], kp['sg'], kp['bg'],
               kp['w1T'], kp['w2T'],
               kp['w3T'], kp['s3'], kp['b3'],
               kp['Msa'], kp['bsa'],
               kp['w4T'], kp['s4'], kp['b4'],
               kp['woT'], kp['so'], kp['bo']]

    in_specs = [pl.BlockSpec((1, C, HW), lambda n: (n, 0, 0)),
                pl.BlockSpec((1, C, HW), lambda n: (n, 0, 0)),
                pl.BlockSpec((1, Cg, HgWg), lambda n: (n, 0, 0))]
    in_specs += [pl.BlockSpec(w.shape, lambda n, _nd=w.ndim: (0,) * _nd) for w in weights]

    out = pl.pallas_call(
        _make_gfb_kernel(C, H, W, _get_roll_convention()),
        out_shape=jax.ShapeDtypeStruct((N, Co, HW), jnp.float32),
        grid=(N,),
        in_specs=in_specs,
        out_specs=pl.BlockSpec((1, Co, HW), lambda n: (n, 0, 0)),
        compiler_params=pltpu.CompilerParams(dimension_semantics=("parallel",)),
    )(ir_cm, vis_cm, g_cm, *weights)

    return out.reshape(N, Co, H, W)


# ----------------------------------------------------------------------------- params

def interp_matrix(out_size, in_size):
    """1-D bilinear interpolation matrix, align_corners=True."""
    A = np.zeros((out_size, in_size), np.float32)
    for o in range(out_size):
        if out_size == 1 or in_size == 1:
            src = 0.0
        else:
            src = o * (in_size - 1) / (out_size - 1)
        i0 = min(int(np.floor(src)), in_size - 1)
        i1 = min(i0 + 1, in_size - 1)
        f = src - i0
        A[o, i0] += 1.0 - f
        A[o, i1] += f
    return A


def init_params(C, Cg, Co, H, W, Hg, Wg):
    keys = iter(jax.random.split(jax.random.PRNGKey(42), 64))

    def nrm(shape, s=0.1):
        return s * jax.random.normal(next(keys), shape, jnp.float32)

    def bn_fold(co):
        # eval-mode BatchNorm folded into per-channel scale & shift
        gamma = jax.random.uniform(next(keys), (co,), jnp.float32, 0.5, 1.5)
        beta = nrm((co,))
        mean = nrm((co,))
        var = jax.random.uniform(next(keys), (co,), jnp.float32, 0.5, 1.5)
        scale = gamma / jnp.sqrt(var + 1e-5)
        shift = beta - mean * scale
        return scale, shift

    p = {}
    for name in ('3', '4'):                                   # conv3 / conv4 : 3x3, C->C
        w, b = nrm((3, 3, C, C)), nrm((C,))
        scale, shift = bn_fold(C)
        p['w' + name] = w
        p['s' + name] = scale.reshape(1, C)
        p['b' + name] = (scale * b + shift).reshape(1, C)
    w, b = nrm((Cg, C)), nrm((C,))                            # conv_globalinfo : 1x1, Cg->C
    scale, shift = bn_fold(C)
    p['wg'], p['sg'], p['bg'] = w, scale.reshape(1, C), (scale * b + shift).reshape(1, C)
    w, b = nrm((3 * C, Co)), nrm((Co,))                       # conv_out : 1x1, 3C->Co
    scale, shift = bn_fold(Co)
    p['wo'], p['so'], p['bo'] = w, scale.reshape(1, Co), (scale * b + shift).reshape(1, Co)
    Cr = C // 16                                              # CA shared MLP (no bias)
    p['w1'], p['w2'] = nrm((C, Cr)), nrm((Cr, C))
    p['wsa'], p['bsa'] = nrm((98,)), nrm((1,))                # SpatialAttention 7x7 conv (2->1)
    p['A_h'] = jnp.asarray(interp_matrix(H, Hg))
    p['A_w'] = jnp.asarray(interp_matrix(W, Wg))
    return p


def prepare_kernel_params(p, C, Co, H, W):
    """Host-side derivation of kernel-layout tensors (channel-major / precomputed matrices)."""
    HW = H * W
    A_h = np.asarray(p['A_h'], np.float32)
    A_w = np.asarray(p['A_w'], np.float32)
    # Kronecker interpolation matrix: BT[i*Wg+j, h*W+w] = A_h[h,i]*A_w[w,j]
    BT = np.ascontiguousarray(np.kron(A_h, A_w).T.astype(np.float32))

    # 3x3 tap validity masks (pad=1): mask[t, oh*W+ow] = 1 iff the tap stays in-image
    masks = np.zeros((9, HW), np.float32)
    for kh in range(3):
        for kw in range(3):
            for oh in range(H):
                ih = oh + kh - 1
                if ih < 0 or ih >= H:
                    continue
                for ow in range(W):
                    iw = ow + kw - 1
                    if 0 <= iw < W:
                        masks[kh * 3 + kw, oh * W + ow] = 1.0

    # 7x7 spatial-attention conv (2->1, pad=3) folded into a (2*HW, HW) matrix
    wsa = np.asarray(p['wsa'], np.float32)
    Msa = np.zeros((2 * HW, HW), np.float32)
    for c in range(2):
        for kh in range(7):
            for kw in range(7):
                wv = wsa[c * 49 + kh * 7 + kw]
                for oh in range(H):
                    ih = oh + kh - 3
                    if ih < 0 or ih >= H:
                        continue
                    for ow in range(W):
                        iw = ow + kw - 3
                        if 0 <= iw < W:
                            Msa[c * HW + ih * W + iw, oh * W + ow] += wv

    def col(a, n):
        return jnp.asarray(np.asarray(a, np.float32).reshape(n, 1))

    def tconv(w):                                             # (3,3,Ci,Co) -> (3, Co, 3*Ci) per-kh-row
        wn = np.asarray(w, np.float32)
        return jnp.asarray(np.ascontiguousarray(wn.transpose(0, 3, 1, 2)).reshape(3, C, 3 * C))

    woT_full = np.asarray(p['wo'], np.float32).T              # (Co, 3C)
    woT = np.ascontiguousarray(woT_full.reshape(Co, 3, C).transpose(1, 0, 2))   # (3, Co, C)

    kp = {
        'BT': jnp.asarray(BT),
        'masks': jnp.asarray(masks),
        'Msa': jnp.asarray(Msa),
        'bsa': jnp.asarray(np.asarray(p['bsa'], np.float32).reshape(1, 1)),
        'wgT': jnp.asarray(np.ascontiguousarray(np.asarray(p['wg'], np.float32).T)),
        'sg': col(p['sg'], C), 'bg': col(p['bg'], C),
        'w1T': jnp.asarray(np.ascontiguousarray(np.asarray(p['w1'], np.float32).T)),
        'w2T': jnp.asarray(np.ascontiguousarray(np.asarray(p['w2'], np.float32).T)),
        'w3T': tconv(p['w3']), 's3': col(p['s3'], C), 'b3': col(p['b3'], C),
        'w4T': tconv(p['w4']), 's4': col(p['s4'], C), 'b4': col(p['b4'], C),
        'woT': jnp.asarray(woT),
        'so': col(p['so'], Co), 'bo': col(p['bo'], Co),
    }
    return kp


# ----------------------------------------------------------------------------- pure-JAX reference

def ref_forward(ir, vis, g, p):
    """Pure-JAX NCHW reference mirroring the PyTorch semantics (eval-mode BN)."""
    N, C, H, W = ir.shape
    g_rs = jnp.einsum('hi,ncij,wj->nchw', p['A_h'], g, p['A_w'])
    gi = jnp.einsum('nchw,cd->ndhw', g_rs, p['wg'])
    gi = jnp.maximum(gi * p['sg'].reshape(1, -1, 1, 1) + p['bg'].reshape(1, -1, 1, 1), 0.0)

    mx, av = jnp.max(ir, axis=(2, 3)), jnp.mean(ir, axis=(2, 3))
    se = lambda v: jnp.maximum(v @ p['w1'], 0.0) @ p['w2']
    att = _sigmoid(se(mx) + se(av))
    irx = ir * att[:, :, None, None]

    def conv3x3(x, w, s, b):
        xp = jnp.pad(x, ((0, 0), (0, 0), (1, 1), (1, 1)))
        acc = 0.0
        for kh in range(3):
            for kw in range(3):
                acc = acc + jnp.einsum('nchw,cd->ndhw', xp[:, :, kh:kh + H, kw:kw + W], w[kh, kw])
        return jnp.maximum(acc * s.reshape(1, -1, 1, 1) + b.reshape(1, -1, 1, 1), 0.0)

    ir3 = conv3x3(irx, p['w3'], p['s3'], p['b3'])

    cat2 = jnp.stack([jnp.max(vis, axis=1), jnp.mean(vis, axis=1)], axis=1)   # (N,2,H,W)
    cp = jnp.pad(cat2, ((0, 0), (0, 0), (3, 3), (3, 3)))
    acc = jnp.full((N, H, W), p['bsa'][0])
    for c in range(2):
        for kh in range(7):
            for kw in range(7):
                acc = acc + p['wsa'][c * 49 + kh * 7 + kw] * cp[:, c, kh:kh + H, kw:kw + W]
    visx = vis * _sigmoid(acc)[:, None]
    vis4 = conv3x3(visx, p['w4'], p['s4'], p['b4'])

    fus = jnp.concatenate([ir3, vis4, gi], axis=1)
    out = jnp.einsum('nchw,cd->ndhw', fus, p['wo'])
    return jnp.maximum(out * p['so'].reshape(1, -1, 1, 1) + p['bo'].reshape(1, -1, 1, 1), 0.0)


# ----------------------------------------------------------------------------- main

if __name__ == "__main__":
    N, C, Cg, Co = 2, 32, 16, 32      # ir_vis_channel=32, global_channel=16, out_channel=32
    H = W = 16
    Hg = Wg = 8

    k1, k2, k3 = jax.random.split(jax.random.PRNGKey(0), 3)
    ir = jax.random.normal(k1, (N, C, H, W), jnp.float32)
    vis = jax.random.normal(k2, (N, C, H, W), jnp.float32)
    global_info = jax.random.normal(k3, (N, Cg, Hg, Wg), jnp.float32)

    params = init_params(C, Cg, Co, H, W, Hg, Wg)
    kparams = prepare_kernel_params(params, C, Co, H, W)

    out = jax.block_until_ready(gfb_forward(ir, vis, global_info, kparams))
    assert out.shape == (N, Co, H, W), out.shape

    ref = ref_forward(ir, vis, global_info, params)
    err = float(jnp.max(jnp.abs(out - ref)))
    if err > 1e-3:
        raise AssertionError(f"Pallas output mismatch vs reference, max abs err = {err}")

    print("KERNEL_OK")
</pallas_src>

<mosaic_0001>
module attributes {stable_mosaic.version = 11 : i64} {
  func.func @probe(%arg0: memref<8x128xf32, #tpu.memory_space<vmem>>, %arg1: memref<8x128xf32, #tpu.memory_space<vmem>>) attributes {dimension_semantics = [], scalar_prefetch = 0 : i64, scratch_operands = 0 : i64, tpu.core_type = #tpu.core_type<tc>} {
    %c0 = arith.constant 0 : index
    %c0_0 = arith.constant 0 : index
    %0 = vector.load %arg0[%c0, %c0_0] : memref<8x128xf32, #tpu.memory_space<vmem>>, vector<8x128xf32>
    %c1_i32 = arith.constant 1 : i32
    %1 = tpu.dynamic_rotate %0 by %c1_i32 dim 1 : vector<8x128xf32>, i32 -> vector<8x128xf32>
    %c0_1 = arith.constant 0 : index
    %c0_2 = arith.constant 0 : index
    %2 = vector.load %arg1[%c0_1, %c0_2] : memref<8x128xf32, #tpu.memory_space<vmem>>, vector<8x128xf32>
    tpu.vector_store %arg1[%c0_1, %c0_2], %1 {strides = array<i32>} : memref<8x128xf32, #tpu.memory_space<vmem>>, vector<8x128xf32>,
    return
  }
}

</mosaic_0001>

<llo_original>
// kernel: tpu_custom_call.1
$region0: #{tpu_custom_call.1}
  #allocation0 [shape = 'u32[]', space=smem, size = 0x4, offset = 0x4, fixed_abs, tag = 'smem constant byte address 0x4 - core index']
  #allocation1 [shape = 'u32[144,128]{1,0:T(1,128)}', space=vmem, size = 0x12000, scoped, tag = 'internal scratch']
  %s0 = inlined_call_operand.hbm [shape: f32[8,128], index: 0, kind: input, shape index: {}]
  %s1 = inlined_call_operand.hbm [shape: f32[8,128], index: 1, kind: output, shape index: {}]
  %s2 = sld [smem:[#allocation0]]
  $region18: #{tpu_custom_call.1} parent=0
    _
  %s4 = ssub.s32 1, %s2
  %s5 = scalar_select 0, %s4, %s2
  $region1: #{tpu_custom_call.1} parent=0
    #allocation2 [shape = 'u8[4096]{0}', space=vmem, size = 0x1000, scoped, tag = 'input window, operand 0, single buffered']
    #allocation3 [shape = 's32[1]{0}', space=sflag, size = 0x4, scoped, tag = 'scoped memory for tpu_custom_call.1']
    #allocation4 [shape = 's32[1]{0}', space=sflag, size = 0x4, scoped, tag = 'scoped memory for tpu_custom_call.1']
    #allocation5 [shape = 'u8[4096]{0}', space=vmem, size = 0x1000, scoped, tag = 'output window, operand 0, single buffered']
    %6 = vsyncpa [#allocation3], 0
    %7 = vsyncpa [#allocation4], 0
    // Predicated region
    $region2: #{tpu_custom_call.1} parent=1 // pred_check
      _
    $region3: #{tpu_custom_call.1} parent=1 // pred_check_branch
      %9 = sbr.rel (0) target = $region5
    $region4: #{tpu_custom_call.1} parent=1 // pred_region
      %s11 = ssub.s32 128, 128
      %12 = vsyncadd [#allocation3], %s11
      %s14 = sshll.u32 [#allocation2], 4
      %s15 = int_to_ptr.vmem [resolvable:$true] %s14
      %17 = dma.hbm_to_vmem [thread:$0]  %s0, 128, %s15, [#allocation3]
    $region5: #{tpu_custom_call.1} parent=1 // pred_fallthru
      _
    // Predicated region
    $region6: #{tpu_custom_call.1} parent=1 // pred_check
      _
    $region7: #{tpu_custom_call.1} parent=1 // pred_check_branch
      %19 = sbr.rel (0) target = $region9
    $region8: #{tpu_custom_call.1} parent=1 // pred_region
      %20 = dma.done [#allocation3], 128
    $region9: #{tpu_custom_call.1} parent=1 // pred_fallthru
      _
    %v21 = vld [vmem:[#allocation2] sm:$0xff]
    %22 = vrot.lane.b32.xlu0 %v21, 1
    %v23 = vpop.permute.xlu0 %22
    %24 = vst [vmem:[#allocation5] sm:$0xff] %v23
    // Predicated region
    $region10: #{tpu_custom_call.1} parent=1 // pred_check
      _
    $region11: #{tpu_custom_call.1} parent=1 // pred_check_branch
      %26 = sbr.rel (0) target = $region13
    $region12: #{tpu_custom_call.1} parent=1 // pred_region
      %s28 = ssub.s32 128, 128
      %29 = vsyncadd [#allocation4], %s28
      %s31 = sshll.u32 [#allocation5], 4
      %s32 = int_to_ptr.vmem [resolvable:$true] %s31
      %34 = dma.vmem_to_hbm [thread:$0]  %s32, 128, %s1, [#allocation4]
    $region13: #{tpu_custom_call.1} parent=1 // pred_fallthru
      _
    // Predicated region
    $region14: #{tpu_custom_call.1} parent=1 // pred_check
      _
    $region15: #{tpu_custom_call.1} parent=1 // pred_check_branch
      %36 = sbr.rel (0) target = $region17
    $region16: #{tpu_custom_call.1} parent=1 // pred_region
      %37 = dma.done [#allocation4], 128
    $region17: #{tpu_custom_call.1} parent=1 // pred_fallthru
      _
    %38 = vsyncpa [#allocation3], 1
    %39 = vsyncpa [#allocation4], 1

</llo_original>
